<compile_context>
chip_gen: v6e
topology: v6e:2x2x1
jax: 0.10.0
libtpu: 0.0.40
codegen_flags: <defaults>
</compile_context>

<pallas_src>
import functools
import math

import jax
import jax.numpy as jnp
from jax.experimental import pallas as pl
from jax.experimental.pallas import tpu as pltpu


def _vmem_limit_bytes():
    # Generation-aware VMEM budget: ~3/4 of physical per-core VMEM
    # (v7x: 64 MiB -> 48 MiB, v5e/v6e: 128 MiB -> 96 MiB), capped at 100 MiB.
    try:
        cap = int(pltpu.get_tpu_info().vmem_capacity_bytes)
    except Exception:
        # Hardware query unavailable -> conservative (v7x-safe) default.
        return 48 * 1024 * 1024
    return min(cap * 3 // 4, 100 * 1024 * 1024)


def _pick_tile(n, preferred=(256, 128, 64, 32, 16, 8)):
    for t in preferred:
        if n % t == 0:
            return t
    return n


def _layer_norm(x, gamma, beta, eps):
    # f32 LayerNorm over the last dim; gamma/beta are (1, D) and broadcast.
    x = x.astype(jnp.float32)
    mean = jnp.mean(x, axis=-1, keepdims=True)
    var = jnp.mean(jnp.square(x - mean), axis=-1, keepdims=True)
    return (x - mean) * jax.lax.rsqrt(var + eps) * gamma + beta


# ---------------- kernel A: LayerNorm1 + fused (rows, 3D) QKV projection ----
def _ln_qkv_kernel(x_ref, g_ref, b_ref, w_ref, bias_ref, qkv_ref, *, eps):
    xn = _layer_norm(x_ref[...], g_ref[...], b_ref[...], eps)
    qkv = jnp.dot(xn.astype(jnp.bfloat16), w_ref[...],
                  preferred_element_type=jnp.float32) + bias_ref[...]
    qkv_ref[...] = qkv.astype(qkv_ref.dtype)


# ---------------- kernel B: per-(batch, head, q-tile) attention -------------
def _attention_kernel(q_ref, k_ref, v_ref, mask_ref, attn_ref, ctx_ref, *, tq):
    qi = pl.program_id(2)
    q = q_ref[0, 0]                       # (tq, dh) bf16, pre-scaled by 1/sqrt(dh)
    k = k_ref[0, 0]                       # (S, dh)  bf16
    v = v_ref[0, 0]                       # (S, dh)  bf16

    # q @ k^T on the MXU (no explicit transpose), f32 accumulation.
    scores = jax.lax.dot_general(
        q, k, dimension_numbers=(((1,), (1,)), ((), ())),
        preferred_element_type=jnp.float32)                       # (tq, S)

    row0 = pl.multiple_of(qi * tq, tq)
    scores = scores + mask_ref[pl.ds(row0, tq), :]

    m = jnp.max(scores, axis=-1, keepdims=True)
    e = jnp.exp(scores - m)
    denom = jnp.sum(e, axis=-1, keepdims=True)
    probs = e * pl.reciprocal(denom, approx=True)                 # EUP divide
    attn_ref[0, 0] = probs.astype(attn_ref.dtype)

    ctx = jnp.dot(probs.astype(jnp.bfloat16), v,
                  preferred_element_type=jnp.float32)             # (tq, dh)
    ctx_ref[0, 0] = ctx.astype(ctx_ref.dtype)


# -------- kernel C: fc projection + residual + LayerNorm2 + FFN + residual --
def _proj_ffn_kernel(ctx_ref, x_ref, w_fc_ref, b_fc_ref, ln2_g_ref, ln2_b_ref,
                     w_ff1_ref, b_ff1_ref, w_ff2_ref, b_ff2_ref, out_ref, *, eps):
    attn_out = jnp.dot(ctx_ref[...], w_fc_ref[...],
                       preferred_element_type=jnp.float32) + b_fc_ref[...]
    res1 = x_ref[...].astype(jnp.float32) + attn_out
    h2 = _layer_norm(res1, ln2_g_ref[...], ln2_b_ref[...], eps)
    ff = jnp.dot(h2.astype(jnp.bfloat16), w_ff1_ref[...],
                 preferred_element_type=jnp.float32) + b_ff1_ref[...]
    ff = jax.nn.gelu(ff, approximate=False)                       # exact erf GELU
    ff = jnp.dot(ff.astype(jnp.bfloat16), w_ff2_ref[...],
                 preferred_element_type=jnp.float32) + b_ff2_ref[...]
    out_ref[...] = (res1 + ff).astype(out_ref.dtype)


def gpt2_decoder_layer(x, mask, params, *, num_heads, eps=1e-5,
                       attn_dtype=jnp.float32):
    B, S, D = x.shape
    assert D % num_heads == 0
    dh = D // num_heads
    d_ff = params["w_ff1"].shape[-1]
    wdt = jnp.bfloat16
    f32 = jnp.float32

    vmem_limit = _vmem_limit_bytes()

    # Fold 1/sqrt(d_head) into the q columns of the qkv Conv1D (host side, f32).
    scale = 1.0 / math.sqrt(dh)
    w_qkv = params["w_qkv"].astype(f32)
    w_qkv = jnp.concatenate([w_qkv[:, :D] * scale, w_qkv[:, D:]], -1).astype(wdt)
    b_qkv = params["b_qkv"].astype(f32)
    b_qkv = jnp.concatenate([b_qkv[:, :D] * scale, b_qkv[:, D:]], -1)

    w_fc = params["w_fc"].astype(wdt)
    w_ff1 = params["w_ff1"].astype(wdt)
    w_ff2 = params["w_ff2"].astype(wdt)

    n_rows = B * S
    tr = _pick_tile(n_rows)                      # row tile for kernels A and C
    tq = S if S <= 512 else _pick_tile(S, (512, 256, 128))   # query tile
    nq = S // tq

    x_rows = x.reshape(n_rows, D)

    # ---- kernel A: LN1 + one wide (rows, 3D) qkv matmul -------------------
    qkv_rows = pl.pallas_call(
        functools.partial(_ln_qkv_kernel, eps=eps),
        out_shape=jax.ShapeDtypeStruct((n_rows, 3 * D), wdt),
        grid=(n_rows // tr,),
        in_specs=[
            pl.BlockSpec((tr, D), lambda i: (i, 0)),
            pl.BlockSpec((1, D), lambda i: (0, 0)),
            pl.BlockSpec((1, D), lambda i: (0, 0)),
            pl.BlockSpec((D, 3 * D), lambda i: (0, 0)),
            pl.BlockSpec((1, 3 * D), lambda i: (0, 0)),
        ],
        out_specs=pl.BlockSpec((tr, 3 * D), lambda i: (i, 0)),
        compiler_params=pltpu.CompilerParams(
            dimension_semantics=("parallel",),
            vmem_limit_bytes=vmem_limit),
    )(x_rows, params["ln1_g"], params["ln1_b"], w_qkv, b_qkv)

    # Head split (XLA relayout outside the kernels): (B*S, 3D) -> (3, B, H, S, dh).
    qkv = qkv_rows.reshape(B, S, 3, num_heads, dh).transpose(2, 0, 3, 1, 4)
    q, k, v = qkv[0], qkv[1], qkv[2]
    mask_f32 = mask.astype(f32)

    attn_bytes = jnp.dtype(attn_dtype).itemsize
    cost_b = pl.CostEstimate(
        flops=4 * B * num_heads * S * S * dh,
        transcendentals=B * num_heads * S * S,
        bytes_accessed=int(3 * B * S * D * 2 + S * S * 4
                           + B * num_heads * S * S * attn_bytes + B * S * D * 2))

    # ---- kernel B: attention per (batch, head, q-tile) --------------------
    attn_prob, ctx = pl.pallas_call(
        functools.partial(_attention_kernel, tq=tq),
        out_shape=(jax.ShapeDtypeStruct((B, num_heads, S, S), attn_dtype),
                   jax.ShapeDtypeStruct((B, num_heads, S, dh), wdt)),
        grid=(B, num_heads, nq),
        in_specs=[
            pl.BlockSpec((1, 1, tq, dh), lambda b, h, qi: (b, h, qi, 0)),
            pl.BlockSpec((1, 1, S, dh), lambda b, h, qi: (b, h, 0, 0)),
            pl.BlockSpec((1, 1, S, dh), lambda b, h, qi: (b, h, 0, 0)),
            pl.BlockSpec((S, S), lambda b, h, qi: (0, 0)),     # mask: DMA'd once
        ],
        out_specs=(
            pl.BlockSpec((1, 1, tq, S), lambda b, h, qi: (b, h, qi, 0)),
            pl.BlockSpec((1, 1, tq, dh), lambda b, h, qi: (b, h, qi, 0)),
        ),
        compiler_params=pltpu.CompilerParams(
            dimension_semantics=("parallel", "parallel", "parallel"),
            vmem_limit_bytes=vmem_limit),
        cost_estimate=cost_b,
    )(q, k, v, mask_f32)

    # Merge heads: (B, H, S, dh) -> (B*S, D) (matches torch transpose+view).
    ctx_rows = ctx.transpose(0, 2, 1, 3).reshape(n_rows, D)

    # ---- kernel C: fc + residual + LN2 + FFN + residual, row-tiled ---------
    out_rows = pl.pallas_call(
        functools.partial(_proj_ffn_kernel, eps=eps),
        out_shape=jax.ShapeDtypeStruct((n_rows, D), x.dtype),
        grid=(n_rows // tr,),
        in_specs=[
            pl.BlockSpec((tr, D), lambda i: (i, 0)),        # ctx rows (bf16)
            pl.BlockSpec((tr, D), lambda i: (i, 0)),        # x rows (residual)
            pl.BlockSpec((D, D), lambda i: (0, 0)),         # w_fc
            pl.BlockSpec((1, D), lambda i: (0, 0)),         # b_fc
            pl.BlockSpec((1, D), lambda i: (0, 0)),         # ln2 gamma
            pl.BlockSpec((1, D), lambda i: (0, 0)),         # ln2 beta
            pl.BlockSpec((D, d_ff), lambda i: (0, 0)),      # w_ff1
            pl.BlockSpec((1, d_ff), lambda i: (0, 0)),      # b_ff1
            pl.BlockSpec((d_ff, D), lambda i: (0, 0)),      # w_ff2
            pl.BlockSpec((1, D), lambda i: (0, 0)),         # b_ff2
        ],
        out_specs=pl.BlockSpec((tr, D), lambda i: (i, 0)),
        compiler_params=pltpu.CompilerParams(
            dimension_semantics=("parallel",),
            vmem_limit_bytes=vmem_limit),
    )(ctx_rows, x_rows, w_fc, params["b_fc"], params["ln2_g"], params["ln2_b"],
      w_ff1, params["b_ff1"], w_ff2, params["b_ff2"])

    return out_rows.reshape(B, S, D), attn_prob


def _reference(x, mask, params, *, num_heads, eps=1e-5):
    """Pure-JAX f32 reference mirroring the PyTorch forward (dropout = identity)."""
    B, S, D = x.shape
    dh = D // num_heads

    def ln(v, g, b):
        mu = jnp.mean(v, axis=-1, keepdims=True)
        var = jnp.mean(jnp.square(v - mu), axis=-1, keepdims=True)
        return (v - mu) / jnp.sqrt(var + eps) * g[0] + b[0]

    h = ln(x, params["ln1_g"], params["ln1_b"])
    qkv = h @ params["w_qkv"] + params["b_qkv"][0]
    q, k, v = jnp.split(qkv, 3, axis=-1)
    reshape = lambda t: t.reshape(B, S, num_heads, dh).transpose(0, 2, 1, 3)
    q, k, v = reshape(q), reshape(k), reshape(v)
    scores = jnp.einsum("bhqd,bhkd->bhqk", q, k) / (dh ** 0.5) + mask
    probs = jax.nn.softmax(scores, axis=-1)
    ctx = jnp.einsum("bhqk,bhkd->bhqd", probs, v)
    ctx = ctx.transpose(0, 2, 1, 3).reshape(B, S, D)
    attn_out = ctx @ params["w_fc"] + params["b_fc"][0]
    res1 = x + attn_out
    h2 = ln(res1, params["ln2_g"], params["ln2_b"])
    ff = jax.nn.gelu(h2 @ params["w_ff1"] + params["b_ff1"][0], approximate=False)
    ff = ff @ params["w_ff2"] + params["b_ff2"][0]
    return res1 + ff, probs


if __name__ == "__main__":
    B, S, D, H = 2, 8, 32, 4
    key = jax.random.PRNGKey(0)
    keys = jax.random.split(key, 8)

    params = {
        "ln1_g": jnp.ones((1, D), jnp.float32),
        "ln1_b": jnp.zeros((1, D), jnp.float32),
        "w_qkv": 0.02 * jax.random.normal(keys[0], (D, 3 * D), jnp.float32),
        "b_qkv": jnp.zeros((1, 3 * D), jnp.float32),
        "w_fc": 0.02 * jax.random.normal(keys[1], (D, D), jnp.float32),
        "b_fc": jnp.zeros((1, D), jnp.float32),
        "ln2_g": jnp.ones((1, D), jnp.float32),
        "ln2_b": jnp.zeros((1, D), jnp.float32),
        "w_ff1": 0.02 * jax.random.normal(keys[2], (D, 4 * D), jnp.float32),
        "b_ff1": jnp.zeros((1, 4 * D), jnp.float32),
        "w_ff2": 0.02 * jax.random.normal(keys[3], (4 * D, D), jnp.float32),
        "b_ff2": jnp.zeros((1, D), jnp.float32),
    }

    x = jax.random.normal(keys[4], (B, S, D), jnp.float32)
    # causal additive mask (0 on/below diagonal, -1e9 above), broadcast over B & H
    causal = jnp.tril(jnp.ones((S, S), jnp.float32))
    mask = jnp.where(causal == 1.0, 0.0, -1e9).astype(jnp.float32)

    out, attn_prob = gpt2_decoder_layer(x, mask, params, num_heads=H)
    out = jax.block_until_ready(out)
    attn_prob = jax.block_until_ready(attn_prob)

    ref_out, ref_attn = _reference(x, mask, params, num_heads=H)
    assert out.shape == (B, S, D) and attn_prob.shape == (B, H, S, S)
    # bf16 matmuls + approx reciprocal => compare against f32 reference with
    # tolerances well above the expected ~1e-3 numerical deltas.
    assert jnp.allclose(out, ref_out, atol=2e-2, rtol=2e-2)
    assert jnp.allclose(attn_prob, ref_attn, atol=5e-3, rtol=2e-2)

    print("KERNEL_OK")
</pallas_src>

<mosaic_0001>
module attributes {stable_mosaic.version = 11 : i64} {
  func.func @_ln_qkv_kernel(%arg0: i32, %arg1: memref<16x32xf32, #tpu.memory_space<vmem>>, %arg2: memref<1x32xf32, #tpu.memory_space<vmem>>, %arg3: memref<1x32xf32, #tpu.memory_space<vmem>>, %arg4: memref<32x96xbf16, #tpu.memory_space<vmem>>, %arg5: memref<1x96xf32, #tpu.memory_space<vmem>>, %arg6: memref<16x96xbf16, #tpu.memory_space<vmem>>) attributes {dimension_semantics = [#tpu.dimension_semantics<parallel>], iteration_bounds = array<i64: 1>, scalar_prefetch = 0 : i64, scratch_operands = 0 : i64, tpu.core_type = #tpu.core_type<tc>, window_params = [{transform_indices = @transform_0, window_bounds = array<i64: 16, 32>}, {pipeline_mode = #tpu.pipeline_mode<synchronous>, transform_indices = @transform_1, window_bounds = array<i64: 1, 32>}, {pipeline_mode = #tpu.pipeline_mode<synchronous>, transform_indices = @transform_2, window_bounds = array<i64: 1, 32>}, {pipeline_mode = #tpu.pipeline_mode<synchronous>, transform_indices = @transform_3, window_bounds = array<i64: 32, 96>}, {pipeline_mode = #tpu.pipeline_mode<synchronous>, transform_indices = @transform_4, window_bounds = array<i64: 1, 96>}, {transform_indices = @transform_5, window_bounds = array<i64: 16, 96>}]} {
    %c0 = arith.constant 0 : index
    %c0_0 = arith.constant 0 : index
    %0 = vector.load %arg1[%c0, %c0_0] : memref<16x32xf32, #tpu.memory_space<vmem>>, vector<16x32xf32>
    %c0_1 = arith.constant 0 : index
    %c0_2 = arith.constant 0 : index
    %1 = vector.load %arg2[%c0_1, %c0_2] : memref<1x32xf32, #tpu.memory_space<vmem>>, vector<1x32xf32>
    %c0_3 = arith.constant 0 : index
    %c0_4 = arith.constant 0 : index
    %2 = vector.load %arg3[%c0_3, %c0_4] : memref<1x32xf32, #tpu.memory_space<vmem>>, vector<1x32xf32>
    %cst = arith.constant dense<0.000000e+00> : vector<16xf32>
    %3 = vector.multi_reduction <add>, %0, %cst [1] : vector<16x32xf32> to vector<16xf32>
    %4 = vector.shape_cast %3 : vector<16xf32> to vector<16x1xf32>
    %cst_5 = arith.constant 3.200000e+01 : f32
    %5 = vector.broadcast %cst_5 : f32 to vector<16x1xf32>
    %6 = arith.divf %4, %5 : vector<16x1xf32>
    %7 = vector.broadcast %6 : vector<16x1xf32> to vector<16x32xf32>
    %8 = arith.subf %0, %7 : vector<16x32xf32>
    %9 = arith.mulf %8, %8 : vector<16x32xf32>
    %cst_6 = arith.constant dense<0.000000e+00> : vector<16xf32>
    %10 = vector.multi_reduction <add>, %9, %cst_6 [1] : vector<16x32xf32> to vector<16xf32>
    %11 = vector.shape_cast %10 : vector<16xf32> to vector<16x1xf32>
    %cst_7 = arith.constant 3.200000e+01 : f32
    %12 = vector.broadcast %cst_7 : f32 to vector<16x1xf32>
    %13 = arith.divf %11, %12 : vector<16x1xf32>
    %14 = vector.broadcast %6 : vector<16x1xf32> to vector<16x32xf32>
    %15 = arith.subf %0, %14 : vector<16x32xf32>
    %cst_8 = arith.constant 9.99999974E-6 : f32
    %16 = vector.broadcast %cst_8 : f32 to vector<16x1xf32>
    %17 = arith.addf %13, %16 : vector<16x1xf32>
    %18 = math.rsqrt %17 : vector<16x1xf32>
    %19 = vector.broadcast %18 : vector<16x1xf32> to vector<16x32xf32>
    %20 = arith.mulf %15, %19 : vector<16x32xf32>
    %21 = vector.broadcast %1 : vector<1x32xf32> to vector<16x32xf32>
    %22 = arith.mulf %20, %21 : vector<16x32xf32>
    %23 = vector.broadcast %2 : vector<1x32xf32> to vector<16x32xf32>
    %24 = arith.addf %22, %23 : vector<16x32xf32>
    %25 = arith.truncf %24 : vector<16x32xf32> to vector<16x32xbf16>
    %c0_9 = arith.constant 0 : index
    %c0_10 = arith.constant 0 : index
    %26 = vector.load %arg4[%c0_9, %c0_10] : memref<32x96xbf16, #tpu.memory_space<vmem>>, vector<32x96xbf16>
    %cst_11 = arith.constant dense<0.000000e+00> : vector<16x96xf32>
    %27 = tpu.matmul %25, %26, %cst_11 {dimension_numbers = #tpu.dot_dimension_numbers<[1], [0], [0], [1], [0, 0, 1, 1], [], []>} : vector<16x32xbf16>, vector<32x96xbf16>, vector<16x96xf32> -> vector<16x96xf32>
    %c0_12 = arith.constant 0 : index
    %c0_13 = arith.constant 0 : index
    %28 = vector.load %arg5[%c0_12, %c0_13] : memref<1x96xf32, #tpu.memory_space<vmem>>, vector<1x96xf32>
    %29 = vector.broadcast %28 : vector<1x96xf32> to vector<16x96xf32>
    %30 = arith.addf %27, %29 : vector<16x96xf32>
    %31 = arith.truncf %30 : vector<16x96xf32> to vector<16x96xbf16>
    %c0_14 = arith.constant 0 : index
    %c0_15 = arith.constant 0 : index
    %32 = vector.load %arg6[%c0_14, %c0_15] : memref<16x96xbf16, #tpu.memory_space<vmem>>, vector<16x96xbf16>
    tpu.vector_store %arg6[%c0_14, %c0_15], %31 {strides = array<i32>} : memref<16x96xbf16, #tpu.memory_space<vmem>>, vector<16x96xbf16>,
    return
  }
  func.func @transform_0(%arg0: i32) -> (i32, i32) {
    %c0_i32 = arith.constant 0 : i32
    %c0_i32_0 = arith.constant 0 : i32
    return %arg0, %c0_i32 : i32, i32
  }
  func.func @transform_1(%arg0: i32) -> (i32, i32) {
    %c0_i32 = arith.constant 0 : i32
    %c0_i32_0 = arith.constant 0 : i32
    %c0_i32_1 = arith.constant 0 : i32
    return %c0_i32, %c0_i32_0 : i32, i32
  }
  func.func @transform_2(%arg0: i32) -> (i32, i32) {
    %c0_i32 = arith.constant 0 : i32
    %c0_i32_0 = arith.constant 0 : i32
    %c0_i32_1 = arith.constant 0 : i32
    return %c0_i32, %c0_i32_0 : i32, i32
  }
  func.func @transform_3(%arg0: i32) -> (i32, i32) {
    %c0_i32 = arith.constant 0 : i32
    %c0_i32_0 = arith.constant 0 : i32
    %c0_i32_1 = arith.constant 0 : i32
    return %c0_i32, %c0_i32_0 : i32, i32
  }
  func.func @transform_4(%arg0: i32) -> (i32, i32) {
    %c0_i32 = arith.constant 0 : i32
    %c0_i32_0 = arith.constant 0 : i32
    %c0_i32_1 = arith.constant 0 : i32
    return %c0_i32, %c0_i32_0 : i32, i32
  }
  func.func @transform_5(%arg0: i32) -> (i32, i32) {
    %c0_i32 = arith.constant 0 : i32
    %c0_i32_0 = arith.constant 0 : i32
    return %arg0, %c0_i32 : i32, i32
  }
}

</mosaic_0001>

<llo_original>
// kernel: tpu_custom_call.1
$region0: #{tpu_custom_call.1}
  #allocation0 [shape = 'u32[]', space=smem, size = 0x4, offset = 0x4, fixed_abs, tag = 'smem constant byte address 0x4 - core index']
  #allocation1 [shape = 'u32[144,128]{1,0:T(1,128)}', space=vmem, size = 0x12000, scoped, tag = 'internal scratch']
  %s0 = inlined_call_operand.hbm [shape: f32[16,32], index: 0, kind: input, shape index: {}]
  %s1 = inlined_call_operand.vmem [shape: f32[1,32], index: 1, kind: input, shape index: {}]
  %s2 = inlined_call_operand.vmem [shape: f32[1,32], index: 2, kind: input, shape index: {}]
  %s3 = inlined_call_operand.hbm [shape: bf16[32,96], index: 3, kind: input, shape index: {}]
  %s4 = inlined_call_operand.vmem [shape: f32[1,96], index: 4, kind: input, shape index: {}]
  %s5 = inlined_call_operand.hbm [shape: bf16[16,96], index: 5, kind: output, shape index: {}]
  %s6 = sld [smem:[#allocation0]]
  $region38: #{tpu_custom_call.1} parent=0
    _
  %s8 = ssub.s32 1, %s6
  %s9 = scalar_select 0, %s8, %s6
  $region1: #{tpu_custom_call.1} parent=0
    #allocation2 [shape = 'u8[8192]{0}', space=vmem, size = 0x2000, scoped, tag = 'input window, operand 0, single buffered']
    #allocation3 [shape = 's32[1]{0}', space=sflag, size = 0x4, scoped, tag = 'scoped memory for tpu_custom_call.1']
    #allocation4 [shape = 's32[1]{0}', space=sflag, size = 0x4, scoped, tag = 'scoped memory for tpu_custom_call.1']
    #allocation5 [shape = 'u8[8192]{0}', space=vmem, size = 0x2000, scoped, tag = 'input window, operand 3, single buffered']
    #allocation6 [shape = 's32[1]{0}', space=sflag, size = 0x4, scoped, tag = 'scoped memory for tpu_custom_call.1']
    #allocation7 [shape = 'u8[4096]{0}', space=vmem, size = 0x1000, scoped, tag = 'output window, operand 0, single buffered']
    %10 = vsyncpa [#allocation3], 0
    %11 = vsyncpa [#allocation6], 0
    %12 = vsyncpa [#allocation4], 0
    // Predicated region
    $region2: #{tpu_custom_call.1} parent=1 // pred_check
      _
    $region3: #{tpu_custom_call.1} parent=1 // pred_check_branch
      %14 = sbr.rel (0) target = $region5
    $region4: #{tpu_custom_call.1} parent=1 // pred_region
      %s16 = ssub.s32 256, 256
      %17 = vsyncadd [#allocation3], %s16
      %s18 = sshll.u32 [#allocation2], 4
      %s19 = int_to_ptr.vmem [resolvable:$true] %s18
      %24 = dma.hbm_to_vmem [thread:$0]  %s0, 256, %s19, [#allocation3], 128, 128, 8
    $region5: #{tpu_custom_call.1} parent=1 // pred_fallthru
      _
    // Predicated region
    $region6: #{tpu_custom_call.1} parent=1 // pred_check
      _
    $region7: #{tpu_custom_call.1} parent=1 // pred_check_branch
      %26 = sbr.rel (0) target = $region9
    $region8: #{tpu_custom_call.1} parent=1 // pred_region
      _
    $region9: #{tpu_custom_call.1} parent=1 // pred_fallthru
      _
    // Predicated region
    $region10: #{tpu_custom_call.1} parent=1 // pred_check
      _
    $region11: #{tpu_custom_call.1} parent=1 // pred_check_branch
      %28 = sbr.rel (0) target = $region13
    $region12: #{tpu_custom_call.1} parent=1 // pred_region
      _
    $region13: #{tpu_custom_call.1} parent=1 // pred_fallthru
      _
    // Predicated region
    $region14: #{tpu_custom_call.1} parent=1 // pred_check
      _
    $region15: #{tpu_custom_call.1} parent=1 // pred_check_branch
      %30 = sbr.rel (0) target = $region17
    $region16: #{tpu_custom_call.1} parent=1 // pred_region
      %s32 = ssub.s32 256, 256
      %33 = vsyncadd [#allocation6], %s32
      %s34 = sshll.u32 [#allocation5], 4
      %s35 = int_to_ptr.vmem [resolvable:$true] %s34
      %40 = dma.hbm_to_vmem [thread:$0]  %s3, 256, %s35, [#allocation6], 64, 64, 4
    $region17: #{tpu_custom_call.1} parent=1 // pred_fallthru
      _
    // Predicated region
    $region18: #{tpu_custom_call.1} parent=1 // pred_check
      _
    $region19: #{tpu_custom_call.1} parent=1 // pred_check_branch
      %42 = sbr.rel (0) target = $region21
    $region20: #{tpu_custom_call.1} parent=1 // pred_region
      _
    $region21: #{tpu_custom_call.1} parent=1 // pred_fallthru
      _
    // Predicated region
    $region22: #{tpu_custom_call.1} parent=1 // pred_check
      _
    $region23: #{tpu_custom_call.1} parent=1 // pred_check_branch
      %44 = sbr.rel (0) target = $region25
    $region24: #{tpu_custom_call.1} parent=1 // pred_region
      %45 = dma.done [#allocation3], 256
    $region25: #{tpu_custom_call.1} parent=1 // pred_fallthru
      _
    // Predicated region
    $region26: #{tpu_custom_call.1} parent=1 // pred_check
      _
    $region27: #{tpu_custom_call.1} parent=1 // pred_check_branch
      %47 = sbr.rel (0) target = $region29
    $region28: #{tpu_custom_call.1} parent=1 // pred_region
      %48 = dma.done [#allocation6], 256
    $region29: #{tpu_custom_call.1} parent=1 // pred_fallthru
      _
    %v50 = vld [vmem:[#allocation2] sm:$0xff]
    %v51 = vld [vmem:[#allocation2 + $0x8] sm:$0xff]
    %v52 = vld [vmem:[%s1] sm:$0x1]
    %v53 = vld [vmem:[%s2] sm:$0x1]
    %vm54 = vcmask 261120
    %v55 = vsel %vm54, %v50, 0.0
    %56 = vadd.xlane.f32.xlu0 %v55
    %v57 = vpop.xlane.xlu0 %56
    %v58 = vsel %vm54, %v51, 0.0
    %59 = vadd.xlane.f32.xlu0 %v58
    %v60 = vpop.xlane.xlu0 %59
    %v61 = vrcp.pop 32.0
    %v62 = vmul.f32 %v57, %v61
    %v63 = vmul.f32 %v60, %v61
    %v64 = vsub.f32 %v50, %v62
    %v65 = vsub.f32 %v51, %v63
    %v66 = vmul.f32 %v64, %v64
    %v67 = vmul.f32 %v65, %v65
    %v68 = vsel %vm54, %v66, 0.0
    %69 = vadd.xlane.f32.xlu0 %v68
    %v70 = vpop.xlane.xlu0 %69
    %v71 = vsel %vm54, %v67, 0.0
    %72 = vadd.xlane.f32.xlu0 %v71
    %v73 = vpop.xlane.xlu0 %72
    %v74 = vmul.f32 %v70, %v61
    %v75 = vmul.f32 %v73, %v61
    %v76 = vadd.f32 %v74, 1e-05
    %v77 = vadd.f32 %v75, 1e-05
    %v78 = vrsqrt.pop %v76
    %v79 = vrsqrt.pop %v77
    %v80 = vmul.f32 %v64, %v78
    %v81 = vmul.f32 %v65, %v79
    %v83 = vlaneseq
    %v84 = vshrl.u32 %v83, 7
    %v85 = vsub.s32 0, %v84
    %v86 = vrot.slane %v52, %v85
    %v88 = vmul.f32 %v80, %v86
    %v89 = vmul.f32 %v81, %v86
    %v91 = vlaneseq
    %v92 = vshrl.u32 %v91, 7
    %v93 = vsub.s32 0, %v92
    %v94 = vrot.slane %v53, %v93
    %v96 = vadd.f32 %v88, %v94
    %v97 = vadd.f32 %v89, %v94
    %v98 = vpack.c.bf16 %v97, %v96
    %v99 = vld [vmem:[#allocation5] sm:$0xf]
    %v100 = vld [vmem:[#allocation5 + $0x4] sm:$0xf]
    %v101 = vld [vmem:[#allocation5 + $0x8] sm:$0xf]
    %v102 = vld [vmem:[#allocation5 + $0xc] sm:$0xf]
    %v103 = vld [vmem:[%s4] sm:$0x1]
    %v105 = vlaneseq
    %v106 = vshrl.u32 %v105, 7
    %v107 = vsub.s32 0, %v106
    %v108 = vrot.slane %v103, %v107
    %v114 = vunpack.c.l.b16 %v99
    %v115 = vunpack.c.l.b16 %v100
    %v116 = vunpack.c.l.b16 %v101
    %v117 = vunpack.c.l.b16 %v102
    %v118 = vpack.c.b16 %v115, %v114
    %v119 = vpack.c.b16 %v117, %v116
    %v123 = vsel %vm54, %v98, 0
    %125 = vmatprep.subr.bf16.mxu0 0
    %126 = vmatpush1.bf16.msra.mxu0 0
    %127 = vmatprep.subr.bf16.mxu0 0
    %128 = vmatpush1.bf16.msra.mxu0 0
    %129 = vmatprep.subr.bf16.mxu0 0
    %130 = vmatpush1.bf16.msra.mxu0 0
    %131 = vmatprep.subr.bf16.mxu0 0
    %132 = vmatpush1.bf16.msra.mxu0 0
    %133 = vmatprep.subr.bf16.mxu0 0
    %134 = vmatpush1.bf16.msra.mxu0 0
    %135 = vmatprep.subr.bf16.mxu0 0
    %136 = vmatpush1.bf16.msra.mxu0 0
    %137 = vmatprep.subr.bf16.mxu0 0
    %138 = vmatpush1.bf16.msra.mxu0 %v119
    %139 = vmatprep.subr.bf16.mxu0 0
    %140 = vmatpush1.bf16.msra.mxu0 %v118
    %141 = vmatprep.subr.bf16.mxu0 0
    %142 = vmatpush2.bf16.msra.mxu0 0
    %143 = vmatprep.subr.bf16.mxu0 0
    %144 = vmatpush2.bf16.msra.mxu0 0
    %145 = vmatprep.subr.bf16.mxu0 0
    %146 = vmatpush2.bf16.msra.mxu0 0
    %147 = vmatprep.subr.bf16.mxu0 0
    %148 = vmatpush2.bf16.msra.mxu0 0
    %149 = vmatprep.subr.bf16.mxu0 0
    %150 = vmatpush2.bf16.msra.mxu0 0
    %151 = vmatprep.subr.bf16.mxu0 0
    %152 = vmatpush2.bf16.msra.mxu0 0
    %153 = vmatprep.subr.bf16.mxu0 0
    %154 = vmatpush2.bf16.msra.mxu0 0
    %155 = vmatprep.subr.bf16.mxu0 0
    %156 = vmatpush2.bf16.msra.mxu0 0
    %157 = vmatprep.mubr.bf16.mxu0 0
    %158 = vmatmul.mubr.bf16.gmra.mxu0 %v123
    %v159 = vpop.f32.mrf.mxu0
    %v160 = vadd.f32 %v108, %v159
    %v161 = vpop.f32.mrf.mxu0
    %v162 = vpop.f32.mrf.mxu0
    %v163 = vadd.f32 %v108, %v162
    %v164 = vpop.f32.mrf.mxu0
    %165 = vdwg.mxu0
    %v166 = vpack.c.bf16 %v163, %v160
    %v168 = vunpack.c.l.b16 %v166
    %v169 = vunpack.c.h.b16 %v166
    %v170 = vpack.c.b16 %v168, %v168
    %v171 = vpack.c.b16 %v169, %v169
    %vm174 = vcmask 781312
    %175 = vst.msk [vmem:[#allocation7] sm:$0xf] %vm174, %v170
    %176 = vst.msk [vmem:[#allocation7 + $0x4] sm:$0xf] %vm174, %v171
    // Predicated region
    $region30: #{tpu_custom_call.1} parent=1 // pred_check
      _
    $region31: #{tpu_custom_call.1} parent=1 // pred_check_branch
      %178 = sbr.rel (0) target = $region33
    $region32: #{tpu_custom_call.1} parent=1 // pred_region
      %s180 = ssub.s32 128, 128
      %181 = vsyncadd [#allocation4], %s180
      %s182 = sshll.u32 [#allocation7], 4
      %s183 = int_to_ptr.vmem [resolvable:$true] %s182
      %188 = dma.vmem_to_hbm [thread:$0]  %s183, 128, %s5, [#allocation4], 64, 64, 4
    $region33: #{tpu_custom_call.1} parent=1 // pred_fallthru
      _
    // Predicated region
    $region34: #{tpu_custom_call.1} parent=1 // pred_check
      _
    $region35: #{tpu_custom_call.1} parent=1 // pred_check_branch
      %190 = sbr.rel (0) target = $region37
    $region36: #{tpu_custom_call.1} parent=1 // pred_region
      %191 = dma.done [#allocation4], 128
    $region37: #{tpu_custom_call.1} parent=1 // pred_fallthru
      _
    %192 = vsyncpa [#allocation3], 1
    %193 = vsyncpa [#allocation6], 1
    %194 = vsyncpa [#allocation4], 1

</llo_original>
